<compile_context>
chip_gen: v6e
topology: v6e:2x2x1
jax: 0.10.0
libtpu: 0.0.40
codegen_flags: <defaults>
</compile_context>

<pallas_src>
import functools

import jax
import jax.numpy as jnp
from jax.experimental import pallas as pl
from jax.experimental.pallas import tpu as pltpu


def _round_up(x, m):
    return (x + m - 1) // m * m


def _l1_loss_kernel(out_ref, tgt_ref, w_ref, num_ref, den_ref, *, n_rows, tile_n):
    c = pl.program_id(0)           # core/slice axis ("parallel")
    i = pl.program_id(1)           # streaming/reduction axis ("arbitrary")

    @pl.when(i == 0)
    def _():
        num_ref[...] = jnp.zeros_like(num_ref)
        den_ref[...] = jnp.zeros_like(den_ref)

    o = out_ref[...].astype(jnp.float32)        # (tile_n, C)
    t = tgt_ref[...].astype(jnp.float32)        # (tile_n, C)
    w = w_ref[...].astype(jnp.float32)          # (tile_n, 1)

    # F.normalize(out, p=2, dim=1): v / max(||v||_2, 1e-12)
    #   == v * rsqrt(max(sum(v^2), 1e-24))      (rsqrt runs on the EUP slot)
    sumsq = jnp.sum(o * o, axis=1, keepdims=True)              # (tile_n, 1)
    inv_norm = jax.lax.rsqrt(jnp.maximum(sumsq, 1e-24))

    # Per-row L1 of the normalized difference: lane reduce on the XLU.
    row_l1 = jnp.sum(jnp.abs(o * inv_norm - t), axis=1, keepdims=True)   # (tile_n, 1)

    # Logical row index (before index-map clamping) -> tail / overshoot mask.
    row = (c * pl.num_programs(1) + i) * tile_n + jax.lax.broadcasted_iota(
        jnp.int32, (tile_n, 1), 0)
    valid = row < n_rows

    # Keep these as selects (NOT 0/1 multiplies): padded/overshoot rows hold
    # unspecified data (possibly NaN/Inf) that must not propagate.
    num_contrib = jnp.where(valid, row_l1 * w, 0.0)             # (tile_n, 1)
    den_contrib = jnp.where(valid, w, 0.0)                      # (tile_n, 1)

    # Broadcast-accumulate the per-step scalars into the resident per-slice
    # (1, 8, 128) output blocks (every element carries the same partial sum;
    # the wrapper reads [:, 0, 0]).  Lane-dense, unmasked stores.
    num_ref[...] += jnp.sum(num_contrib)
    den_ref[...] += jnp.sum(den_contrib)


def l1_loss_pallas(coord, intensity, out, target, weight, tile_n=None):
    # asserts mirroring the PyTorch module
    assert out.shape[0] == coord.shape[0] == target.shape[0]
    assert out.shape == target.shape

    N, C = out.shape
    itemsize = jnp.dtype(out.dtype).itemsize

    # VMEM buffer budget: 2 inputs x 2 buffers x (tn, C)@itemsize
    #                   + 2 buffers x (tn, 1 -> 128 lanes) f32 for the weight block.
    # ~24 MiB of buffers under an explicit 32 MiB scoped-VMEM limit, safe on
    # v5e (128 MiB phys), v6e (128 MiB) and v7x (64 MiB).
    vmem_budget = 24 * 1024 * 1024
    per_row_bytes = 4 * C * itemsize + 2 * 128 * 4
    cap = max(8, vmem_budget // per_row_bytes)
    if tile_n is None:
        tile_n = cap
    tn = max(8, _round_up(min(tile_n, cap, _round_up(N, 8)), 8))

    total_tiles = pl.cdiv(N, tn)
    # Split the streamed tiles across (up to) 2 TensorCores (v7x megacore);
    # on 1-TC chips (v5e/v6e) this is just two sequential slices.
    num_slices = 2 if total_tiles >= 2 else 1
    inner = pl.cdiv(total_tiles, num_slices)

    def row_block(c, i):
        # Clamp so an overshooting tile of the last slice re-reads a valid tile;
        # its contributions are zeroed by the in-kernel row mask.
        return jnp.minimum(c * inner + i, total_tiles - 1)

    in_specs = (
        pl.BlockSpec((tn, C), lambda c, i: (row_block(c, i), 0)),
        pl.BlockSpec((tn, C), lambda c, i: (row_block(c, i), 0)),
        pl.BlockSpec((tn, 1), lambda c, i: (row_block(c, i), 0)),
    )
    out_specs = (
        pl.BlockSpec((1, 8, 128), lambda c, i: (c, 0, 0)),
        pl.BlockSpec((1, 8, 128), lambda c, i: (c, 0, 0)),
    )
    out_shape = (
        jax.ShapeDtypeStruct((num_slices, 8, 128), jnp.float32),
        jax.ShapeDtypeStruct((num_slices, 8, 128), jnp.float32),
    )

    w2d = weight.reshape(N, 1)
    kernel = functools.partial(_l1_loss_kernel, n_rows=N, tile_n=tn)

    cost = pl.CostEstimate(
        flops=int(6 * N * C),
        transcendentals=int(N),
        bytes_accessed=int(2 * N * C * itemsize
                           + N * jnp.dtype(weight.dtype).itemsize + 2 * 8 * 128 * 4),
    )

    num, den = pl.pallas_call(
        kernel,
        out_shape=out_shape,
        grid_spec=pltpu.PrefetchScalarGridSpec(
            num_scalar_prefetch=0,
            grid=(num_slices, inner),
            in_specs=in_specs,
            out_specs=out_specs,
        ),
        compiler_params=pltpu.CompilerParams(
            dimension_semantics=("parallel", "arbitrary"),
            vmem_limit_bytes=32 * 1024 * 1024,
        ),
        cost_estimate=cost,
    )(out, target, w2d)

    # Sum the per-slice partials; every element of a slice's block holds the same
    # partial sum, so read [:, 0, 0].
    return jnp.sum(num[:, 0, 0]) / jnp.sum(den[:, 0, 0])


def _reference(out, target, weight):
    o = out.astype(jnp.float32)
    norm = jnp.sqrt(jnp.sum(o * o, axis=1, keepdims=True))
    o_n = o / jnp.maximum(norm, 1e-12)
    l1 = jnp.abs(o_n - target.astype(jnp.float32))
    return (l1 * weight[:, None]).sum() / weight.sum()


if __name__ == "__main__":
    key = jax.random.PRNGKey(0)
    k1, k2, k3, k4, k5 = jax.random.split(key, 5)

    N, C = 64, 32
    coord = jax.random.normal(k1, (N, 3), dtype=jnp.float32)       # unused by loss
    intensity = jax.random.normal(k2, (N, 1), dtype=jnp.float32)   # unused by loss
    out = jax.random.normal(k3, (N, C), dtype=jnp.float32)
    target = jax.random.normal(k4, (N, C), dtype=jnp.float32)
    weight = jax.random.uniform(k5, (N,), dtype=jnp.float32) + 0.1

    ref = _reference(out, target, weight)

    # default path (single tile covers all rows, single slice)
    loss = jax.block_until_ready(l1_loss_pallas(coord, intensity, out, target, weight))
    assert jnp.allclose(loss, ref, rtol=1e-5, atol=1e-5), (loss, ref)

    # multi-tile path: small tile forces 2 slices x several grid steps
    loss_mt = jax.block_until_ready(
        l1_loss_pallas(coord, intensity, out, target, weight, tile_n=16))
    assert jnp.allclose(loss_mt, ref, rtol=1e-5, atol=1e-5), (loss_mt, ref)

    # ragged N: partial last block + clamped overshoot tile on the second slice
    Nr = 37
    ref_r = _reference(out[:Nr], target[:Nr], weight[:Nr])
    loss_r = jax.block_until_ready(
        l1_loss_pallas(coord[:Nr], intensity[:Nr], out[:Nr], target[:Nr],
                       weight[:Nr], tile_n=16))
    assert jnp.allclose(loss_r, ref_r, rtol=1e-5, atol=1e-5), (loss_r, ref_r)

    print("KERNEL_OK")
</pallas_src>

<mosaic_0001>
module attributes {stable_mosaic.version = 11 : i64} {
  func.func @_l1_loss_kernel(%arg0: i32, %arg1: i32, %arg2: memref<64x32xf32, #tpu.memory_space<vmem>>, %arg3: memref<64x32xf32, #tpu.memory_space<vmem>>, %arg4: memref<64x1xf32, #tpu.memory_space<vmem>>, %arg5: memref<1x8x128xf32, #tpu.memory_space<vmem>>, %arg6: memref<1x8x128xf32, #tpu.memory_space<vmem>>) attributes {dimension_semantics = [#tpu.dimension_semantics<parallel>, #tpu.dimension_semantics<arbitrary>], iteration_bounds = array<i64: 1, 1>, scalar_prefetch = 0 : i64, scratch_operands = 0 : i64, tpu.core_type = #tpu.core_type<tc>, window_params = [{transform_indices = @transform_0, window_bounds = array<i64: 64, 32>}, {transform_indices = @transform_1, window_bounds = array<i64: 64, 32>}, {transform_indices = @transform_2, window_bounds = array<i64: 64, 1>}, {transform_indices = @transform_3, window_bounds = array<i64: 1, 8, 128>}, {transform_indices = @transform_4, window_bounds = array<i64: 1, 8, 128>}]} {
    %c0_i32 = arith.constant 0 : i32
    %0 = arith.cmpi eq, %arg1, %c0_i32 : i32
    %1 = arith.extui %0 : i1 to i32
    %c0_i32_0 = arith.constant 0 : i32
    %2 = arith.cmpi ne, %1, %c0_i32_0 : i32
    scf.if %2 {
      %cst_25 = arith.constant 0.000000e+00 : f32
      %47 = vector.broadcast %cst_25 : f32 to vector<1x8x128xf32>
      %c0_26 = arith.constant 0 : index
      %c0_27 = arith.constant 0 : index
      %c0_28 = arith.constant 0 : index
      %48 = vector.load %arg5[%c0_26, %c0_27, %c0_28] : memref<1x8x128xf32, #tpu.memory_space<vmem>>, vector<1x8x128xf32>
      tpu.vector_store %arg5[%c0_26, %c0_27, %c0_28], %47 {strides = array<i32>} : memref<1x8x128xf32, #tpu.memory_space<vmem>>, vector<1x8x128xf32>,
      %cst_29 = arith.constant 0.000000e+00 : f32
      %49 = vector.broadcast %cst_29 : f32 to vector<1x8x128xf32>
      %c0_30 = arith.constant 0 : index
      %c0_31 = arith.constant 0 : index
      %c0_32 = arith.constant 0 : index
      %50 = vector.load %arg6[%c0_30, %c0_31, %c0_32] : memref<1x8x128xf32, #tpu.memory_space<vmem>>, vector<1x8x128xf32>
      tpu.vector_store %arg6[%c0_30, %c0_31, %c0_32], %49 {strides = array<i32>} : memref<1x8x128xf32, #tpu.memory_space<vmem>>, vector<1x8x128xf32>,
    } else {
    }
    %c0 = arith.constant 0 : index
    %c0_1 = arith.constant 0 : index
    %3 = vector.load %arg2[%c0, %c0_1] : memref<64x32xf32, #tpu.memory_space<vmem>>, vector<64x32xf32>
    %c0_2 = arith.constant 0 : index
    %c0_3 = arith.constant 0 : index
    %4 = vector.load %arg3[%c0_2, %c0_3] : memref<64x32xf32, #tpu.memory_space<vmem>>, vector<64x32xf32>
    %c0_4 = arith.constant 0 : index
    %c0_5 = arith.constant 0 : index
    %5 = vector.load %arg4[%c0_4, %c0_5] : memref<64x1xf32, #tpu.memory_space<vmem>>, vector<64x1xf32>
    %6 = arith.mulf %3, %3 : vector<64x32xf32>
    %cst = arith.constant dense<0.000000e+00> : vector<64xf32>
    %7 = vector.multi_reduction <add>, %6, %cst [1] : vector<64x32xf32> to vector<64xf32>
    %8 = vector.shape_cast %7 : vector<64xf32> to vector<64x1xf32>
    %cst_6 = arith.constant 1.000000e-24 : f32
    %9 = vector.broadcast %cst_6 : f32 to vector<64x1xf32>
    %10 = arith.maximumf %8, %9 : vector<64x1xf32>
    %11 = math.rsqrt %10 : vector<64x1xf32>
    %12 = vector.broadcast %11 : vector<64x1xf32> to vector<64x32xf32>
    %13 = arith.mulf %3, %12 : vector<64x32xf32>
    %14 = arith.subf %13, %4 : vector<64x32xf32>
    %15 = math.absf %14 : vector<64x32xf32>
    %cst_7 = arith.constant dense<0.000000e+00> : vector<64xf32>
    %16 = vector.multi_reduction <add>, %15, %cst_7 [1] : vector<64x32xf32> to vector<64xf32>
    %17 = vector.shape_cast %16 : vector<64xf32> to vector<64x1xf32>
    %c1_i32 = arith.constant 1 : i32
    %18 = arith.muli %arg0, %c1_i32 : i32
    %19 = arith.addi %18, %arg1 : i32
    %c64_i32 = arith.constant 64 : i32
    %20 = arith.muli %19, %c64_i32 : i32
    %21 = tpu.iota {dimensions = array<i32: 0>} : vector<64x1xi32>
    %22 = vector.broadcast %20 : i32 to vector<64x1xi32>
    %23 = arith.addi %22, %21 : vector<64x1xi32>
    %c64_i32_8 = arith.constant 64 : i32
    %24 = vector.broadcast %c64_i32_8 : i32 to vector<64x1xi32>
    %25 = arith.cmpi slt, %23, %24 : vector<64x1xi32>
    %26 = arith.mulf %17, %5 : vector<64x1xf32>
    %cst_9 = arith.constant 0.000000e+00 : f32
    %27 = vector.broadcast %cst_9 : f32 to vector<64x1xf32>
    %28 = arith.select %25, %26, %27 : vector<64x1xi1>, vector<64x1xf32>
    %cst_10 = arith.constant 0.000000e+00 : f32
    %29 = vector.broadcast %cst_10 : f32 to vector<64x1xf32>
    %30 = arith.select %25, %5, %29 : vector<64x1xi1>, vector<64x1xf32>
    %c0_11 = arith.constant 0 : index
    %c0_12 = arith.constant 0 : index
    %c0_13 = arith.constant 0 : index
    %31 = vector.load %arg5[%c0_11, %c0_12, %c0_13] : memref<1x8x128xf32, #tpu.memory_space<vmem>>, vector<1x8x128xf32>
    %32 = vector.shape_cast %28 : vector<64x1xf32> to vector<1x64x1xf32>
    %cst_14 = arith.constant dense<0.000000e+00> : vector<1xf32>
    %33 = vector.multi_reduction <add>, %32, %cst_14 [1, 2] : vector<1x64x1xf32> to vector<1xf32>
    %34 = vector.shape_cast %33 : vector<1xf32> to vector<1x1x1xf32>
    %35 = vector.extract %34[0, 0, 0] : f32 from vector<1x1x1xf32>
    %36 = vector.broadcast %35 : f32 to vector<1x8x128xf32>
    %37 = arith.addf %31, %36 : vector<1x8x128xf32>
    %c0_15 = arith.constant 0 : index
    %c0_16 = arith.constant 0 : index
    %c0_17 = arith.constant 0 : index
    %38 = vector.load %arg5[%c0_15, %c0_16, %c0_17] : memref<1x8x128xf32, #tpu.memory_space<vmem>>, vector<1x8x128xf32>
    tpu.vector_store %arg5[%c0_15, %c0_16, %c0_17], %37 {strides = array<i32>} : memref<1x8x128xf32, #tpu.memory_space<vmem>>, vector<1x8x128xf32>,
    %c0_18 = arith.constant 0 : index
    %c0_19 = arith.constant 0 : index
    %c0_20 = arith.constant 0 : index
    %39 = vector.load %arg6[%c0_18, %c0_19, %c0_20] : memref<1x8x128xf32, #tpu.memory_space<vmem>>, vector<1x8x128xf32>
    %40 = vector.shape_cast %30 : vector<64x1xf32> to vector<1x64x1xf32>
    %cst_21 = arith.constant dense<0.000000e+00> : vector<1xf32>
    %41 = vector.multi_reduction <add>, %40, %cst_21 [1, 2] : vector<1x64x1xf32> to vector<1xf32>
    %42 = vector.shape_cast %41 : vector<1xf32> to vector<1x1x1xf32>
    %43 = vector.extract %42[0, 0, 0] : f32 from vector<1x1x1xf32>
    %44 = vector.broadcast %43 : f32 to vector<1x8x128xf32>
    %45 = arith.addf %39, %44 : vector<1x8x128xf32>
    %c0_22 = arith.constant 0 : index
    %c0_23 = arith.constant 0 : index
    %c0_24 = arith.constant 0 : index
    %46 = vector.load %arg6[%c0_22, %c0_23, %c0_24] : memref<1x8x128xf32, #tpu.memory_space<vmem>>, vector<1x8x128xf32>
    tpu.vector_store %arg6[%c0_22, %c0_23, %c0_24], %45 {strides = array<i32>} : memref<1x8x128xf32, #tpu.memory_space<vmem>>, vector<1x8x128xf32>,
    return
  }
  func.func @transform_0(%arg0: i32, %arg1: i32) -> (i32, i32) {
    %c1_i32 = arith.constant 1 : i32
    %0 = arith.muli %arg0, %c1_i32 : i32
    %1 = arith.addi %0, %arg1 : i32
    %c0_i32 = arith.constant 0 : i32
    %2 = arith.minsi %1, %c0_i32 : i32
    %c0_i32_0 = arith.constant 0 : i32
    %c0_i32_1 = arith.constant 0 : i32
    return %2, %c0_i32_0 : i32, i32
  }
  func.func @transform_1(%arg0: i32, %arg1: i32) -> (i32, i32) {
    %c1_i32 = arith.constant 1 : i32
    %0 = arith.muli %arg0, %c1_i32 : i32
    %1 = arith.addi %0, %arg1 : i32
    %c0_i32 = arith.constant 0 : i32
    %2 = arith.minsi %1, %c0_i32 : i32
    %c0_i32_0 = arith.constant 0 : i32
    %c0_i32_1 = arith.constant 0 : i32
    return %2, %c0_i32_0 : i32, i32
  }
  func.func @transform_2(%arg0: i32, %arg1: i32) -> (i32, i32) {
    %c1_i32 = arith.constant 1 : i32
    %0 = arith.muli %arg0, %c1_i32 : i32
    %1 = arith.addi %0, %arg1 : i32
    %c0_i32 = arith.constant 0 : i32
    %2 = arith.minsi %1, %c0_i32 : i32
    %c0_i32_0 = arith.constant 0 : i32
    %c0_i32_1 = arith.constant 0 : i32
    return %2, %c0_i32_0 : i32, i32
  }
  func.func @transform_3(%arg0: i32, %arg1: i32) -> (i32, i32, i32) {
    %c0_i32 = arith.constant 0 : i32
    %c0_i32_0 = arith.constant 0 : i32
    %c0_i32_1 = arith.constant 0 : i32
    return %arg0, %c0_i32, %c0_i32_0 : i32, i32, i32
  }
  func.func @transform_4(%arg0: i32, %arg1: i32) -> (i32, i32, i32) {
    %c0_i32 = arith.constant 0 : i32
    %c0_i32_0 = arith.constant 0 : i32
    %c0_i32_1 = arith.constant 0 : i32
    return %arg0, %c0_i32, %c0_i32_0 : i32, i32, i32
  }
}

</mosaic_0001>

<llo_original>
// kernel: tpu_custom_call.1
$region0: #{tpu_custom_call.1}
  #allocation0 [shape = 'u32[]', space=smem, size = 0x4, offset = 0x4, fixed_abs, tag = 'smem constant byte address 0x4 - core index']
  #allocation1 [shape = 'u32[144,128]{1,0:T(1,128)}', space=vmem, size = 0x12000, scoped, tag = 'internal scratch']
  %s0 = inlined_call_operand.vmem [shape: f32[64,32], index: 0, kind: input, shape index: {}]
  %s1 = inlined_call_operand.vmem [shape: f32[64,32], index: 1, kind: input, shape index: {}]
  %s2 = inlined_call_operand.vmem [shape: f32[64,1], index: 2, kind: input, shape index: {}]
  %s3 = inlined_call_operand.hbm [shape: f32[1,8,128], index: 3, kind: output, shape index: {0}]
  %s4 = inlined_call_operand.hbm [shape: f32[1,8,128], index: 4, kind: output, shape index: {1}]
  %5 = xla_tuple %s3, %s4
  %s6 = sld [smem:[#allocation0]]
  $region34: #{tpu_custom_call.1} parent=0
    _
  %s8 = ssub.s32 1, %s6
  %s9 = scalar_select 0, %s8, %s6
  $region1: #{tpu_custom_call.1} parent=0
    #allocation2 [shape = 'u8[4096]{0}', space=vmem, size = 0x1000, scoped, tag = 'output window, operand 0, single buffered']
    #allocation3 [shape = 's32[1]{0}', space=sflag, size = 0x4, scoped, tag = 'scoped memory for tpu_custom_call.1']
    #allocation4 [shape = 'u8[4096]{0}', space=vmem, size = 0x1000, scoped, tag = 'output window, operand 1, single buffered']
    #allocation5 [shape = 's32[1]{0}', space=sflag, size = 0x4, scoped, tag = 'scoped memory for tpu_custom_call.1']
    %10 = vsyncpa [#allocation3], 0
    %11 = vsyncpa [#allocation5], 0
    // Predicated region
    $region2: #{tpu_custom_call.1} parent=1 // pred_check
      _
    $region3: #{tpu_custom_call.1} parent=1 // pred_check_branch
      %13 = sbr.rel (0) target = $region5
    $region4: #{tpu_custom_call.1} parent=1 // pred_region
      %s14 = sadd.s32 0, 0
      %p15 = scmp.lt.s32.totalorder %s14, 0
      %s16 = scalar_select %p15, %s14, 0
      %s17 = smul.u32 8, %s16
      %p18 = scmp.lt.s32.totalorder %s17, 7
      %s19 = scalar_select %p18, %s17, 7
      %s20 = smul.addr %s19, 8
      %s21 = scalar_lea.vmem %s0, %s20
      %s22 = sadd.s32 0, 0
      %p23 = scmp.lt.s32.totalorder %s22, 0
      %s24 = scalar_select %p23, %s22, 0
      %s25 = smul.u32 8, %s24
    $region5: #{tpu_custom_call.1} parent=1 // pred_fallthru
      _
    // Predicated region
    $region6: #{tpu_custom_call.1} parent=1 // pred_check
      _
    $region7: #{tpu_custom_call.1} parent=1 // pred_check_branch
      %27 = sbr.rel (0) target = $region9
    $region8: #{tpu_custom_call.1} parent=1 // pred_region
      %s28 = sadd.s32 0, 0
      %p29 = scmp.lt.s32.totalorder %s28, 0
      %s30 = scalar_select %p29, %s28, 0
      %s31 = smul.u32 8, %s30
      %p32 = scmp.lt.s32.totalorder %s31, 7
      %s33 = scalar_select %p32, %s31, 7
      %s34 = smul.addr %s33, 8
      %s35 = scalar_lea.vmem %s1, %s34
      %s36 = sadd.s32 0, 0
      %p37 = scmp.lt.s32.totalorder %s36, 0
      %s38 = scalar_select %p37, %s36, 0
      %s39 = smul.u32 8, %s38
    $region9: #{tpu_custom_call.1} parent=1 // pred_fallthru
      _
    // Predicated region
    $region10: #{tpu_custom_call.1} parent=1 // pred_check
      _
    $region11: #{tpu_custom_call.1} parent=1 // pred_check_branch
      %41 = sbr.rel (0) target = $region13
    $region12: #{tpu_custom_call.1} parent=1 // pred_region
      %s42 = sadd.s32 0, 0
      %p43 = scmp.lt.s32.totalorder %s42, 0
      %s44 = scalar_select %p43, %s42, 0
      %s45 = smul.u32 8, %s44
      %p46 = scmp.lt.s32.totalorder %s45, 7
      %s47 = scalar_select %p46, %s45, 7
      %s48 = smul.addr %s47, 8
      %s49 = scalar_lea.vmem %s2, %s48
      %s50 = sadd.s32 0, 0
      %p51 = scmp.lt.s32.totalorder %s50, 0
      %s52 = scalar_select %p51, %s50, 0
      %s53 = smul.u32 8, %s52
    $region13: #{tpu_custom_call.1} parent=1 // pred_fallthru
      _
    %s54 = sadd.s32 0, 0
    %p55 = scmp.lt.s32.totalorder %s54, 0
    %s56 = scalar_select %p55, %s54, 0
    %s57 = smul.u32 8, %s56
    %p58 = scmp.lt.s32.totalorder %s57, 7
    %s59 = scalar_select %p58, %s57, 7
    %s60 = smul.addr %s59, 8
    %s61 = scalar_lea.vmem %s0, %s60
    %s62 = sadd.s32 0, 0
    %p63 = scmp.lt.s32.totalorder %s62, 0
    %s64 = scalar_select %p63, %s62, 0
    %s65 = smul.u32 8, %s64
    %p66 = scmp.lt.s32.totalorder %s65, 7
    %s67 = scalar_select %p66, %s65, 7
    %s68 = smul.addr %s67, 8
    %s69 = scalar_lea.vmem %s1, %s68
    %s70 = sadd.s32 0, 0
    %p71 = scmp.lt.s32.totalorder %s70, 0
    %s72 = scalar_select %p71, %s70, 0
    %s73 = smul.u32 8, %s72
    %p74 = scmp.lt.s32.totalorder %s73, 7
    %s75 = scalar_select %p74, %s73, 7
    %s76 = smul.addr %s75, 8
    %s77 = scalar_lea.vmem %s2, %s76
    %s78 = sadd.s32 0, 0
    %p79 = scmp.lt.s32.totalorder %s78, 0
    %s80 = scalar_select %p79, %s78, 0
    %s81 = smul.u32 8, %s80
    %p82 = scmp.lt.s32.totalorder %s81, 7
    %s83 = scalar_select %p82, %s81, 7
    %s84 = smul.addr %s83, 8
    %s85 = scalar_lea.vmem %s0, %s84
    %s86 = sadd.s32 0, 0
    %p87 = scmp.lt.s32.totalorder %s86, 0
    %s88 = scalar_select %p87, %s86, 0
    %s89 = smul.u32 8, %s88
    %s90 = sadd.s32 0, 0
    %p91 = scmp.lt.s32.totalorder %s90, 0
    %s92 = scalar_select %p91, %s90, 0
    %s93 = smul.u32 8, %s92
    %p94 = scmp.lt.s32.totalorder %s93, 7
    %s95 = scalar_select %p94, %s93, 7
    %s96 = smul.addr %s95, 8
    %s97 = scalar_lea.vmem %s1, %s96
    %s98 = sadd.s32 0, 0
    %p99 = scmp.lt.s32.totalorder %s98, 0
    %s100 = scalar_select %p99, %s98, 0
    %s101 = smul.u32 8, %s100
    %s102 = sadd.s32 0, 0
    %p103 = scmp.lt.s32.totalorder %s102, 0
    %s104 = scalar_select %p103, %s102, 0
    %s105 = smul.u32 8, %s104
    %p106 = scmp.lt.s32.totalorder %s105, 7
    %s107 = scalar_select %p106, %s105, 7
    %s108 = smul.addr %s107, 8
    %s109 = scalar_lea.vmem %s2, %s108
    %s110 = sadd.s32 0, 0
    %p111 = scmp.lt.s32.totalorder %s110, 0
    %s112 = scalar_select %p111, %s110, 0
    %s113 = smul.u32 8, %s112
    %p114 = scmp.eq.s32.totalorder 0, 0
    // Predicated region
    $region14: #{tpu_custom_call.1} parent=1 // pred_check
      %p115 = pneg %p114
    $region15: #{tpu_custom_call.1} parent=1 // pred_check_branch
      %117 = sbr.rel (%p115) target = $region17
    $region16: #{tpu_custom_call.1} parent=1 // pred_region
      %118 = vst [vmem:[#allocation2] sm:$0xff] 0.0
      %119 = vst [vmem:[#allocation4] sm:$0xff] 0.0
    $region17: #{tpu_custom_call.1} parent=1 // pred_fallthru
      _
    %v120 = vld [vmem:[%s85] sm:$0xff]
    %v121 = vld [vmem:[%s85 + $0x8] sm:$0xff]
    %v122 = vld [vmem:[%s85 + $0x10] sm:$0xff]
    %v123 = vld [vmem:[%s85 + $0x18] sm:$0xff]
    %v124 = vld [vmem:[%s85 + $0x20] sm:$0xff]
    %v125 = vld [vmem:[%s85 + $0x28] sm:$0xff]
    %v126 = vld [vmem:[%s85 + $0x30] sm:$0xff]
    %v127 = vld [vmem:[%s85 + $0x38] sm:$0xff]
    %v128 = vld [vmem:[%s97] sm:$0xff]
    %v129 = vld [vmem:[%s97 + $0x8] sm:$0xff]
    %v130 = vld [vmem:[%s97 + $0x10] sm:$0xff]
    %v131 = vld [vmem:[%s97 + $0x18] sm:$0xff]
    %v132 = vld [vmem:[%s97 + $0x20] sm:$0xff]
    %v133 = vld [vmem:[%s97 + $0x28] sm:$0xff]
    %v134 = vld [vmem:[%s97 + $0x30] sm:$0xff]
    %v135 = vld [vmem:[%s97 + $0x38] sm:$0xff]
    %v136 = vld [vmem:[%s109] sm:$0xff]
    %v137 = vld [vmem:[%s109 + $0x8] sm:$0xff]
    %v138 = vld [vmem:[%s109 + $0x10] sm:$0xff]
    %v139 = vld [vmem:[%s109 + $0x18] sm:$0xff]
    %v140 = vld [vmem:[%s109 + $0x20] sm:$0xff]
    %v141 = vld [vmem:[%s109 + $0x28] sm:$0xff]
    %v142 = vld [vmem:[%s109 + $0x30] sm:$0xff]
    %v143 = vld [vmem:[%s109 + $0x38] sm:$0xff]
    %v144 = vmul.f32 %v120, %v120
    %v145 = vmul.f32 %v121, %v121
    %v146 = vmul.f32 %v122, %v122
    %v147 = vmul.f32 %v123, %v123
    %v148 = vmul.f32 %v124, %v124
    %v149 = vmul.f32 %v125, %v125
    %v150 = vmul.f32 %v126, %v126
    %v151 = vmul.f32 %v127, %v127
    %vm152 = vcmask 261120
    %v153 = vsel %vm152, %v144, 0.0
    %154 = vadd.xlane.f32.xlu0 %v153
    %v155 = vpop.xlane.xlu0 %154
    %v156 = vsel %vm152, %v145, 0.0
    %157 = vadd.xlane.f32.xlu0 %v156
    %v158 = vpop.xlane.xlu0 %157
    %v159 = vsel %vm152, %v146, 0.0
    %160 = vadd.xlane.f32.xlu0 %v159
    %v161 = vpop.xlane.xlu0 %160
    %v162 = vsel %vm152, %v147, 0.0
    %163 = vadd.xlane.f32.xlu0 %v162
    %v164 = vpop.xlane.xlu0 %163
    %v165 = vsel %vm152, %v148, 0.0
    %166 = vadd.xlane.f32.xlu0 %v165
    %v167 = vpop.xlane.xlu0 %166
    %v168 = vsel %vm152, %v149, 0.0
    %169 = vadd.xlane.f32.xlu0 %v168
    %v170 = vpop.xlane.xlu0 %169
    %v171 = vsel %vm152, %v150, 0.0
    %172 = vadd.xlane.f32.xlu0 %v171
    %v173 = vpop.xlane.xlu0 %172
    %v174 = vsel %vm152, %v151, 0.0
    %175 = vadd.xlane.f32.xlu0 %v174
    %v176 = vpop.xlane.xlu0 %175
    %v177 = vmax.f32 %v155, 1e-24
    %v178 = vmax.f32 %v158, 1e-24
    %v179 = vmax.f32 %v161, 1e-24
    %v180 = vmax.f32 %v164, 1e-24
    %v181 = vmax.f32 %v167, 1e-24
    %v182 = vmax.f32 %v170, 1e-24
    %v183 = vmax.f32 %v173, 1e-24
    %v184 = vmax.f32 %v176, 1e-24
    %v185 = vrsqrt.pop %v177
    %v186 = vrsqrt.pop %v178
    %v187 = vrsqrt.pop %v179
    %v188 = vrsqrt.pop %v180
    %v189 = vrsqrt.pop %v181
    %v190 = vrsqrt.pop %v182
    %v191 = vrsqrt.pop %v183
    %v192 = vrsqrt.pop %v184
    %v193 = vmul.f32 %v120, %v185
    %v194 = vmul.f32 %v121, %v186
    %v195 = vmul.f32 %v122, %v187
    %v196 = vmul.f32 %v123, %v188
    %v197 = vmul.f32 %v124, %v189
    %v198 = vmul.f32 %v125, %v190
    %v199 = vmul.f32 %v126, %v191
    %v200 = vmul.f32 %v127, %v192
    %v201 = vsub.f32 %v193, %v128
    %v202 = vsub.f32 %v194, %v129
    %v203 = vsub.f32 %v195, %v130
    %v204 = vsub.f32 %v196, %v131
    %v205 = vsub.f32 %v197, %v132
    %v206 = vsub.f32 %v198, %v133
    %v207 = vsub.f32 %v199, %v134
    %v208 = vsub.f32 %v200, %v135
    %v209 = vand.u32 2147483647, %v201
    %v210 = vand.u32 2147483647, %v202
    %v211 = vand.u32 2147483647, %v203
    %v212 = vand.u32 2147483647, %v204
    %v213 = vand.u32 2147483647, %v205
    %v214 = vand.u32 2147483647, %v206
    %v215 = vand.u32 2147483647, %v207
    %v216 = vand.u32 2147483647, %v208
    %v217 = vsel %vm152, %v209, 0.0
    %218 = vadd.xlane.f32.xlu0 %v217
    %v219 = vpop.xlane.xlu0 %218
    %v220 = vsel %vm152, %v210, 0.0
    %221 = vadd.xlane.f32.xlu0 %v220
    %v222 = vpop.xlane.xlu0 %221
    %v223 = vsel %vm152, %v211, 0.0
    %224 = vadd.xlane.f32.xlu0 %v223
    %v225 = vpop.xlane.xlu0 %224
    %v226 = vsel %vm152, %v212, 0.0
    %227 = vadd.xlane.f32.xlu0 %v226
    %v228 = vpop.xlane.xlu0 %227
    %v229 = vsel %vm152, %v213, 0.0
    %230 = vadd.xlane.f32.xlu0 %v229
    %v231 = vpop.xlane.xlu0 %230
    %v232 = vsel %vm152, %v214, 0.0
    %233 = vadd.xlane.f32.xlu0 %v232
    %v234 = vpop.xlane.xlu0 %233
    %v235 = vsel %vm152, %v215, 0.0
    %236 = vadd.xlane.f32.xlu0 %v235
    %v237 = vpop.xlane.xlu0 %236
    %v238 = vsel %vm152, %v216, 0.0
    %239 = vadd.xlane.f32.xlu0 %v238
    %v240 = vpop.xlane.xlu0 %239
    %s241 = sadd.s32 0, 0
    %s242 = smul.u32 %s241, 64
    %v243 = vlaneseq
    %v244 = vshrl.u32 %v243, 7
    %v245 = vadd.s32 %v244, 8
    %v246 = vadd.s32 %v244, 16
    %v247 = vadd.s32 %v244, 24
    %v248 = vadd.s32 %v244, 32
    %v249 = vadd.s32 %v244, 40
    %v250 = vadd.s32 %v244, 48
    %v251 = vadd.s32 %v244, 56
    %v252 = vstv %s242
    %v253 = vadd.s32 %v252, %v244
    %v254 = vadd.s32 %v252, %v245
    %v255 = vadd.s32 %v252, %v246
    %v256 = vadd.s32 %v252, %v247
    %v257 = vadd.s32 %v252, %v248
    %v258 = vadd.s32 %v252, %v249
    %v259 = vadd.s32 %v252, %v250
    %v260 = vadd.s32 %v252, %v251
    %vm261 = vcmp.lt.s32.totalorder %v253, 64
    %vm262 = vcmp.lt.s32.totalorder %v254, 64
    %vm263 = vcmp.lt.s32.totalorder %v255, 64
    %vm264 = vcmp.lt.s32.totalorder %v256, 64
    %vm265 = vcmp.lt.s32.totalorder %v257, 64
    %vm266 = vcmp.lt.s32.totalorder %v258, 64
    %vm267 = vcmp.lt.s32.totalorder %v259, 64
    %vm268 = vcmp.lt.s32.totalorder %v260, 64
    %v269 = vmul.f32 %v219, %v136
    %v270 = vmul.f32 %v222, %v137
    %v271 = vmul.f32 %v225, %v138
    %v272 = vmul.f32 %v228, %v139
    %v273 = vmul.f32 %v231, %v140
    %v274 = vmul.f32 %v234, %v141
    %v275 = vmul.f32 %v237, %v142
    %v276 = vmul.f32 %v240, %v143
    %v277 = vsel %vm261, %v269, 0.0
    %v278 = vsel %vm262, %v270, 0.0
    %v279 = vsel %vm263, %v271, 0.0
    %v280 = vsel %vm264, %v272, 0.0
    %v281 = vsel %vm265, %v273, 0.0
    %v282 = vsel %vm266, %v274, 0.0
    %v283 = vsel %vm267, %v275, 0.0
    %v284 = vsel %vm268, %v276, 0.0
    %v285 = vsel %vm261, %v136, 0.0
    %v286 = vsel %vm262, %v137, 0.0
    %v287 = vsel %vm263, %v138, 0.0
    %v288 = vsel %vm264, %v139, 0.0
    %v289 = vsel %vm265, %v140, 0.0
    %v290 = vsel %vm266, %v141, 0.0
    %v291 = vsel %vm267, %v142, 0.0
    %v292 = vsel %vm268, %v143, 0.0
    %v293 = vld [vmem:[#allocation2] sm:$0xff]
    %vm294 = vcmask 7168
    %v295 = vsel %vm294, %v277, 0.0
    %v296 = vsel %vm294, %v278, 0.0
    %v297 = vadd.f32 %v295, %v296
    %v298 = vsel %vm294, %v279, 0.0
    %v299 = vadd.f32 %v297, %v298
    %v300 = vsel %vm294, %v280, 0.0
    %v301 = vadd.f32 %v299, %v300
    %v302 = vsel %vm294, %v281, 0.0
    %v303 = vadd.f32 %v301, %v302
    %v304 = vsel %vm294, %v282, 0.0
    %v305 = vadd.f32 %v303, %v304
    %v306 = vsel %vm294, %v283, 0.0
    %v307 = vadd.f32 %v305, %v306
    %v308 = vsel %vm294, %v284, 0.0
    %v309 = vadd.f32 %v307, %v308
    %310 = vadd.xlane.f32.xlu0 %v309
    %v311 = vpop.xlane.xlu0 %310
    %v312 = vrot.slane %v311, 4
    %v313 = vadd.f32 %v311, %v312
    %v314 = vrot.slane %v313, 2
    %v315 = vadd.f32 %v313, %v314
    %v316 = vrot.slane %v315, 1
    %v317 = vadd.f32 %v315, %v316
    %s318 = vtos %v317
    %v319 = vstv %s318
    %v320 = vadd.f32 %v293, %v319
    %321 = vst [vmem:[#allocation2] sm:$0xff] %v320
    %v322 = vld [vmem:[#allocation4] sm:$0xff]
    %v323 = vsel %vm294, %v285, 0.0
    %v324 = vsel %vm294, %v286, 0.0
    %v325 = vadd.f32 %v323, %v324
    %v326 = vsel %vm294, %v287, 0.0
    %v327 = vadd.f32 %v325, %v326
    %v328 = vsel %vm294, %v288, 0.0
    %v329 = vadd.f32 %v327, %v328
    %v330 = vsel %vm294, %v289, 0.0
    %v331 = vadd.f32 %v329, %v330
    %v332 = vsel %vm294, %v290, 0.0
    %v333 = vadd.f32 %v331, %v332
    %v334 = vsel %vm294, %v291, 0.0
    %v335 = vadd.f32 %v333, %v334
    %v336 = vsel %vm294, %v292, 0.0
    %v337 = vadd.f32 %v335, %v336
    %338 = vadd.xlane.f32.xlu0 %v337
    %v339 = vpop.xlane.xlu0 %338
    %v340 = vrot.slane %v339, 4
    %v341 = vadd.f32 %v339, %v340
    %v342 = vrot.slane %v341, 2
    %v343 = vadd.f32 %v341, %v342
    %v344 = vrot.slane %v343, 1
    %v345 = vadd.f32 %v343, %v344
    %s346 = vtos %v345
    %v347 = vstv %s346
    %v348 = vadd.f32 %v322, %v347
    %349 = vst [vmem:[#allocation4] sm:$0xff] %v348
    // Predicated region
    $region18: #{tpu_custom_call.1} parent=1 // pred_check
      _
    $region19: #{tpu_custom_call.1} parent=1 // pred_check_branch
      %351 = sbr.rel (0) target = $region21
    $region20: #{tpu_custom_call.1} parent=1 // pred_region
      %s353 = ssub.s32 128, 128
      %354 = vsyncadd [#allocation3], %s353
      %s356 = sshll.u32 [#allocation2], 4
      %s357 = int_to_ptr.vmem [resolvable:$true] %s356
      %359 = dma.vmem_to_hbm [thread:$0]  %s357, 128, %s3, [#allocation3]
    $region21: #{tpu_custom_call.1} parent=1 // pred_fallthru
      _
    // Predicated region
    $region22: #{tpu_custom_call.1} parent=1 // pred_check
      _
    $region23: #{tpu_custom_call.1} parent=1 // pred_check_branch
      %361 = sbr.rel (0) target = $region25
    $region24: #{tpu_custom_call.1} parent=1 // pred_region
      %s363 = ssub.s32 128, 128
      %364 = vsyncadd [#allocation5], %s363
      %s366 = sshll.u32 [#allocation4], 4
      %s367 = int_to_ptr.vmem [resolvable:$true] %s366
      %369 = dma.vmem_to_hbm [thread:$0]  %s367, 128, %s4, [#allocation5]
    $region25: #{tpu_custom_call.1} parent=1 // pred_fallthru
      _
    // Predicated region
    $region26: #{tpu_custom_call.1} parent=1 // pred_check
      _
    $region27: #{tpu_custom_call.1} parent=1 // pred_check_branch
      %371 = sbr.rel (0) target = $region29
    $region28: #{tpu_custom_call.1} parent=1 // pred_region
      %372 = dma.done [#allocation3], 128
    $region29: #{tpu_custom_call.1} parent=1 // pred_fallthru
      _
    // Predicated region
    $region30: #{tpu_custom_call.1} parent=1 // pred_check
      _
    $region31: #{tpu_custom_call.1} parent=1 // pred_check_branch
      %374 = sbr.rel (0) target = $region33
    $region32: #{tpu_custom_call.1} parent=1 // pred_region
      %375 = dma.done [#allocation5], 128
    $region33: #{tpu_custom_call.1} parent=1 // pred_fallthru
      _
    %376 = vsyncpa [#allocation3], 1
    %377 = vsyncpa [#allocation5], 1

</llo_original>
